<compile_context>
chip_gen: v5e
topology: v5e:2x2
jax: 0.10.0
libtpu: 0.0.40
codegen_flags: <defaults>
</compile_context>

<pallas_src>
import functools

import jax
import jax.numpy as jnp
from jax.experimental import pallas as pl
from jax.experimental.pallas import tpu as pltpu

_LANES = 128
_SUBLANES = 8


def _sublane_quantum(dtype):
    # Min second-minor tile: 8 for 4-byte, 16 for 2-byte, 32 for 1-byte dtypes.
    return max(_SUBLANES, 32 // jnp.dtype(dtype).itemsize)


def _rmse_partial_kernel(yhat_ref, y_ref, out_ref, *, tm, g2,
                         valid_full_rows, valid_rem_lanes):
    c = pl.program_id(0)          # "parallel" split (2-way on v7x megacore)
    i = pl.program_id(1)          # reduction steps

    @pl.when(i == 0)
    def _init():
        out_ref[...] = jnp.zeros_like(out_ref)          # (8,128) resident accumulator

    d = yhat_ref[...].astype(jnp.float32) - y_ref[...].astype(jnp.float32)
    d2 = d * d

    logical_block = c * g2 + i                           # may exceed real block count
    row_base = logical_block * tm
    fully_valid = (row_base + tm) <= valid_full_rows

    def _accumulate(vals):
        # Sublane-aligned partial reduce: (tm,128) -> (tm//8, 8, 128) -> (8,128).
        out_ref[...] += jnp.sum(vals.reshape(tm // _SUBLANES, _SUBLANES, _LANES),
                                axis=0)

    @pl.when(fully_valid)
    def _fast_path():
        _accumulate(d2)

    @pl.when(jnp.logical_not(fully_valid))
    def _masked_tail():
        row = row_base + jax.lax.broadcasted_iota(jnp.int32, (tm, _LANES), 0)
        lane = jax.lax.broadcasted_iota(jnp.int32, (tm, _LANES), 1)
        valid = (row < valid_full_rows) | ((row == valid_full_rows) &
                                           (lane < valid_rem_lanes))
        _accumulate(jnp.where(valid, d2, 0.0))


def _as_lane_slab(a, rows_padded):
    """Flatten (native dtype) and reshape to [rows_padded, 128]; pad only if needed."""
    flat = a.reshape(-1)
    pad = rows_padded * _LANES - flat.shape[0]
    if pad:
        flat = jnp.pad(flat, (0, pad))
    return flat.reshape(rows_padded, _LANES)


def rmse_loss_pallas(yhat, y, eps=1e-6, block_rows=8192):
    """RMSE loss between two arrays of identical (arbitrary) shape / dtype."""
    assert yhat.shape == y.shape, (yhat.shape, y.shape)
    n = yhat.size
    if n == 0:
        raise ValueError("RMSELoss over zero elements is undefined.")

    q = max(_sublane_quantum(yhat.dtype), _sublane_quantum(y.dtype))
    rows = pl.cdiv(n, _LANES)
    rows_padded = ((rows + q - 1) // q) * q              # keeps tm % 8 == 0 below
    tm_cap = max(q, (int(block_rows) // q) * q)
    tm = rows_padded if rows_padded <= tm_cap else tm_cap
    nblocks = pl.cdiv(rows_padded, tm)
    num_splits = 2 if nblocks >= 2 else 1                # both TCs on v7x
    g2 = pl.cdiv(nblocks, num_splits)

    yhat2d = _as_lane_slab(yhat, rows_padded)
    y2d = _as_lane_slab(y, rows_padded)

    def in_index(c, i):
        # Clamp so a possible odd-tail duplicate block stays in bounds; the
        # kernel masks its contribution to zero via the logical block index.
        return (jnp.minimum(c * g2 + i, nblocks - 1), 0)

    in_bytes = jnp.dtype(yhat.dtype).itemsize + jnp.dtype(y.dtype).itemsize
    bytes_per_step = tm * _LANES * in_bytes
    vmem_limit = int(min(48 << 20, max(32 << 20, 2 * bytes_per_step + (4 << 20))))

    cost = pl.CostEstimate(
        flops=3 * n,
        transcendentals=0,
        bytes_accessed=n * in_bytes + num_splits * _SUBLANES * _LANES * 4,
    )

    kernel = functools.partial(
        _rmse_partial_kernel,
        tm=tm,
        g2=g2,
        valid_full_rows=n // _LANES,
        valid_rem_lanes=n % _LANES,
    )

    partials = pl.pallas_call(
        kernel,
        out_shape=jax.ShapeDtypeStruct((num_splits * _SUBLANES, _LANES), jnp.float32),
        grid=(num_splits, g2),
        in_specs=[
            pl.BlockSpec((tm, _LANES), in_index),
            pl.BlockSpec((tm, _LANES), in_index),
        ],
        out_specs=pl.BlockSpec((_SUBLANES, _LANES), lambda c, i: (c, 0)),
        compiler_params=pltpu.CompilerParams(
            dimension_semantics=("parallel", "arbitrary"),
            vmem_limit_bytes=vmem_limit,
        ),
        cost_estimate=cost,
    )(yhat2d, y2d)

    total = jnp.sum(partials)
    return jnp.sqrt(total * (1.0 / n) + jnp.float32(eps))


def rmse_loss_ref(yhat, y, eps=1e-6):
    return jnp.sqrt(jnp.mean((yhat - y) ** 2) + eps)


if __name__ == "__main__":
    key = jax.random.PRNGKey(0)
    k1, k2, k3, k4, k5, k6 = jax.random.split(key, 6)
    eps = 1e-6

    # Case 1: lane-aligned f32, tiny block_rows -> grid=(2,2): multi-step
    # accumulation, 2-way parallel split, mask-free fast path.
    yhat = jax.random.normal(k1, (8, 4, 128), jnp.float32)
    y = jax.random.normal(k2, (8, 4, 128), jnp.float32)
    loss = jax.block_until_ready(rmse_loss_pallas(yhat, y, eps=eps, block_rows=8))
    ref = rmse_loss_ref(yhat, y, eps)
    assert loss.shape == (), loss.shape
    assert jnp.allclose(loss, ref, atol=1e-5, rtol=1e-5), (loss, ref)

    # Case 2: ragged f32 -> single block, in-kernel tail mask.
    yhat2 = jax.random.normal(k3, (5, 37), jnp.float32)
    y2 = jax.random.normal(k4, (5, 37), jnp.float32)
    loss2 = jax.block_until_ready(rmse_loss_pallas(yhat2, y2, eps=eps))
    ref2 = rmse_loss_ref(yhat2, y2, eps)
    assert jnp.allclose(loss2, ref2, atol=1e-5, rtol=1e-5), (loss2, ref2)

    # Case 3: odd block count (3 blocks, 2-way split) -> clamped duplicate block
    # must be masked to zero contribution.
    yhat3 = jax.random.normal(k5, (24, 128), jnp.float32)
    y3 = jax.random.normal(k6, (24, 128), jnp.float32)
    loss3 = jax.block_until_ready(rmse_loss_pallas(yhat3, y3, eps=eps, block_rows=8))
    ref3 = rmse_loss_ref(yhat3, y3, eps)
    assert jnp.allclose(loss3, ref3, atol=1e-5, rtol=1e-5), (loss3, ref3)

    # Case 4: bf16 inputs streamed natively over HBM (half the bytes), f32 math
    # inside the kernel; ragged rows exercise the mask with rem == 0.
    yhat4 = jax.random.normal(k1, (16, 160), jnp.float32).astype(jnp.bfloat16)
    y4 = jax.random.normal(k2, (16, 160), jnp.float32).astype(jnp.bfloat16)
    loss4 = jax.block_until_ready(rmse_loss_pallas(yhat4, y4, eps=eps))
    ref4 = rmse_loss_ref(yhat4.astype(jnp.float32), y4.astype(jnp.float32), eps)
    assert jnp.allclose(loss4, ref4, atol=1e-5, rtol=1e-5), (loss4, ref4)

    print("KERNEL_OK")
</pallas_src>

<mosaic_0001>
module attributes {stable_mosaic.version = 11 : i64} {
  func.func @_rmse_partial_kernel(%arg0: i32, %arg1: i32, %arg2: memref<8x128xf32, #tpu.memory_space<vmem>>, %arg3: memref<8x128xf32, #tpu.memory_space<vmem>>, %arg4: memref<8x128xf32, #tpu.memory_space<vmem>>) attributes {dimension_semantics = [#tpu.dimension_semantics<parallel>, #tpu.dimension_semantics<arbitrary>], iteration_bounds = array<i64: 2, 2>, scalar_prefetch = 0 : i64, scratch_operands = 0 : i64, tpu.core_type = #tpu.core_type<tc>, window_params = [{transform_indices = @transform_0, window_bounds = array<i64: 8, 128>}, {transform_indices = @transform_1, window_bounds = array<i64: 8, 128>}, {transform_indices = @transform_2, window_bounds = array<i64: 8, 128>}]} {
    %c0_i32 = arith.constant 0 : i32
    %0 = arith.cmpi eq, %arg1, %c0_i32 : i32
    %1 = arith.extui %0 : i1 to i32
    %c0_i32_0 = arith.constant 0 : i32
    %2 = arith.cmpi ne, %1, %c0_i32_0 : i32
    scf.if %2 {
      %cst = arith.constant 0.000000e+00 : f32
      %17 = vector.broadcast %cst : f32 to vector<8x128xf32>
      %c0_7 = arith.constant 0 : index
      %c0_8 = arith.constant 0 : index
      %18 = vector.load %arg4[%c0_7, %c0_8] : memref<8x128xf32, #tpu.memory_space<vmem>>, vector<8x128xf32>
      tpu.vector_store %arg4[%c0_7, %c0_8], %17 {strides = array<i32>} : memref<8x128xf32, #tpu.memory_space<vmem>>, vector<8x128xf32>,
    } else {
    }
    %c0 = arith.constant 0 : index
    %c0_1 = arith.constant 0 : index
    %3 = vector.load %arg2[%c0, %c0_1] : memref<8x128xf32, #tpu.memory_space<vmem>>, vector<8x128xf32>
    %c0_2 = arith.constant 0 : index
    %c0_3 = arith.constant 0 : index
    %4 = vector.load %arg3[%c0_2, %c0_3] : memref<8x128xf32, #tpu.memory_space<vmem>>, vector<8x128xf32>
    %5 = arith.subf %3, %4 : vector<8x128xf32>
    %6 = arith.mulf %5, %5 : vector<8x128xf32>
    %c2_i32 = arith.constant 2 : i32
    %7 = arith.muli %arg0, %c2_i32 : i32
    %8 = arith.addi %7, %arg1 : i32
    %c8_i32 = arith.constant 8 : i32
    %9 = arith.muli %8, %c8_i32 : i32
    %c8_i32_4 = arith.constant 8 : i32
    %10 = arith.addi %9, %c8_i32_4 : i32
    %c32_i32 = arith.constant 32 : i32
    %11 = arith.cmpi sle, %10, %c32_i32 : i32
    %12 = arith.extui %11 : i1 to i32
    %c0_i32_5 = arith.constant 0 : i32
    %13 = arith.cmpi ne, %12, %c0_i32_5 : i32
    scf.if %13 {
      %c0_7 = arith.constant 0 : index
      %c0_8 = arith.constant 0 : index
      %17 = vector.load %arg4[%c0_7, %c0_8] : memref<8x128xf32, #tpu.memory_space<vmem>>, vector<8x128xf32>
      %18 = vector.shape_cast %6 : vector<8x128xf32> to vector<1x8x128xf32>
      %cst = arith.constant dense<0.000000e+00> : vector<8x128xf32>
      %19 = vector.multi_reduction <add>, %18, %cst [0] : vector<1x8x128xf32> to vector<8x128xf32>
      %20 = arith.addf %17, %19 : vector<8x128xf32>
      %c0_9 = arith.constant 0 : index
      %c0_10 = arith.constant 0 : index
      %21 = vector.load %arg4[%c0_9, %c0_10] : memref<8x128xf32, #tpu.memory_space<vmem>>, vector<8x128xf32>
      tpu.vector_store %arg4[%c0_9, %c0_10], %20 {strides = array<i32>} : memref<8x128xf32, #tpu.memory_space<vmem>>, vector<8x128xf32>,
    } else {
    }
    %true = arith.constant true
    %14 = arith.xori %11, %true : i1
    %15 = arith.extui %14 : i1 to i32
    %c0_i32_6 = arith.constant 0 : i32
    %16 = arith.cmpi ne, %15, %c0_i32_6 : i32
    scf.if %16 {
      %17 = tpu.iota {dimensions = array<i32: 0>} : vector<8x128xi32>
      %18 = vector.broadcast %9 : i32 to vector<8x128xi32>
      %19 = arith.addi %18, %17 : vector<8x128xi32>
      %20 = tpu.iota {dimensions = array<i32: 1>} : vector<8x128xi32>
      %c32_i32_7 = arith.constant 32 : i32
      %21 = vector.broadcast %c32_i32_7 : i32 to vector<8x128xi32>
      %22 = arith.cmpi slt, %19, %21 : vector<8x128xi32>
      %c32_i32_8 = arith.constant 32 : i32
      %23 = vector.broadcast %c32_i32_8 : i32 to vector<8x128xi32>
      %24 = arith.cmpi eq, %19, %23 : vector<8x128xi32>
      %c0_i32_9 = arith.constant 0 : i32
      %25 = vector.broadcast %c0_i32_9 : i32 to vector<8x128xi32>
      %26 = arith.cmpi slt, %20, %25 : vector<8x128xi32>
      %27 = arith.andi %24, %26 : vector<8x128xi1>
      %28 = arith.ori %22, %27 : vector<8x128xi1>
      %cst = arith.constant 0.000000e+00 : f32
      %29 = vector.broadcast %cst : f32 to vector<8x128xf32>
      %30 = arith.select %28, %6, %29 : vector<8x128xi1>, vector<8x128xf32>
      %c0_10 = arith.constant 0 : index
      %c0_11 = arith.constant 0 : index
      %31 = vector.load %arg4[%c0_10, %c0_11] : memref<8x128xf32, #tpu.memory_space<vmem>>, vector<8x128xf32>
      %32 = vector.shape_cast %30 : vector<8x128xf32> to vector<1x8x128xf32>
      %cst_12 = arith.constant dense<0.000000e+00> : vector<8x128xf32>
      %33 = vector.multi_reduction <add>, %32, %cst_12 [0] : vector<1x8x128xf32> to vector<8x128xf32>
      %34 = arith.addf %31, %33 : vector<8x128xf32>
      %c0_13 = arith.constant 0 : index
      %c0_14 = arith.constant 0 : index
      %35 = vector.load %arg4[%c0_13, %c0_14] : memref<8x128xf32, #tpu.memory_space<vmem>>, vector<8x128xf32>
      tpu.vector_store %arg4[%c0_13, %c0_14], %34 {strides = array<i32>} : memref<8x128xf32, #tpu.memory_space<vmem>>, vector<8x128xf32>,
    } else {
    }
    return
  }
  func.func @transform_0(%arg0: i32, %arg1: i32) -> (i32, i32) {
    %c2_i32 = arith.constant 2 : i32
    %0 = arith.muli %arg0, %c2_i32 : i32
    %1 = arith.addi %0, %arg1 : i32
    %c3_i32 = arith.constant 3 : i32
    %2 = arith.minsi %1, %c3_i32 : i32
    %c0_i32 = arith.constant 0 : i32
    %c0_i32_0 = arith.constant 0 : i32
    return %2, %c0_i32 : i32, i32
  }
  func.func @transform_1(%arg0: i32, %arg1: i32) -> (i32, i32) {
    %c2_i32 = arith.constant 2 : i32
    %0 = arith.muli %arg0, %c2_i32 : i32
    %1 = arith.addi %0, %arg1 : i32
    %c3_i32 = arith.constant 3 : i32
    %2 = arith.minsi %1, %c3_i32 : i32
    %c0_i32 = arith.constant 0 : i32
    %c0_i32_0 = arith.constant 0 : i32
    return %2, %c0_i32 : i32, i32
  }
  func.func @transform_2(%arg0: i32, %arg1: i32) -> (i32, i32) {
    %c0_i32 = arith.constant 0 : i32
    %c0_i32_0 = arith.constant 0 : i32
    return %arg0, %c0_i32 : i32, i32
  }
}

</mosaic_0001>

<llo_original>
// kernel: tpu_custom_call.1
$region0: #{tpu_custom_call.1}
  #allocation0 [shape = 'u32[]', space=smem, size = 0x4, offset = 0x4, fixed_abs, tag = 'smem constant byte address 0x4 - core index']
  #allocation1 [shape = 'u32[72,128]{1,0:T(1,128)}', space=vmem, size = 0x9000, scoped, tag = 'internal scratch']
  %s0 = inlined_call_operand.hbm [shape: f32[32,128], index: 0, kind: input, shape index: {}]
  %s1 = inlined_call_operand.hbm [shape: f32[32,128], index: 1, kind: input, shape index: {}]
  %s2 = inlined_call_operand.hbm [shape: f32[16,128], index: 2, kind: output, shape index: {}]
  %s3 = sld [smem:[#allocation0]]
  $region61: #{tpu_custom_call.1} parent=0
    _
  %s5 = ssub.s32 1, %s3
  %s6 = scalar_select 0, %s5, %s3
  $region1: #{tpu_custom_call.1} parent=0
    #allocation2 [shape = 'u8[8192]{0}', space=vmem, size = 0x2000, scoped, tag = 'input window, operand 0']
    #allocation3 [shape = 's32[2]{0}', space=sflag, size = 0x8, scoped, tag = 'scoped memory for tpu_custom_call.1']
    #allocation4 [shape = 's32[2]{0}', space=sflag, size = 0x8, scoped, tag = 'scoped memory for tpu_custom_call.1']
    #allocation5 [shape = 'u8[8192]{0}', space=vmem, size = 0x2000, scoped, tag = 'input window, operand 1']
    #allocation6 [shape = 's32[2]{0}', space=sflag, size = 0x8, scoped, tag = 'scoped memory for tpu_custom_call.1']
    #allocation7 [shape = 'u8[8192]{0}', space=vmem, size = 0x2000, scoped, tag = 'output window, operand 0']
    %7 = vsyncpa [#allocation3], 0
    %s8 = scalar_lea.sflag [#allocation3], 1
    %9 = vsyncpa %s8, 0
    %10 = vsyncpa [#allocation6], 0
    %s11 = scalar_lea.sflag [#allocation6], 1
    %12 = vsyncpa %s11, 0
    %13 = vsyncpa [#allocation4], 0
    %s14 = scalar_lea.sflag [#allocation4], 1
    %15 = vsyncpa %s14, 0
    loop: start=0, step=1, limit=6
    $region2: #{tpu_custom_call.1} parent=1 // loop_pre_header
      _
    $region3: #{tpu_custom_call.1} parent=1 // loop_header
      %s17 = sphi 0, %s21
      %p18 = scmp.ge.s32.totalorder %s17, 6
      %s24 = sphi 0, %s36
      %s25 = sphi 0, %s32
      %s26 = sphi 0, %s24
      %s27 = sphi 0, %s25
      %s28 = sphi 0, %s26
      %s29 = sphi 0, %s27
      %s47 = sphi 0, %s49
      %s50 = sphi 0, %s47
      %s51 = sphi 0, %s50
      %s67 = sphi 0, %s51
      %s81 = sphi 0, %s83
      %s84 = sphi 0, %s81
      %s85 = sphi 0, %s84
      %s101 = sphi 0, %s85
      %s107 = sphi 0, %s109
      %s110 = sphi 0, %s107
      %s111 = sphi 0, %s110
      %s127 = sphi 0, %s111
    $region4: #{tpu_custom_call.1} parent=1 // loop_header_branch
      %20 = sbr.rel (%p18) target = $region8
    $region5: #{tpu_custom_call.1} parent=1 // loop_body
      %s22 = ssub.s32 %s17, 1
      %s23 = ssub.s32 %s17, 2
      %s30 = sadd.s32 1, %s25
      %p31 = scmp.ge.s32.totalorder %s30, 2
      %s32 = scalar_select %p31, 0, %s30
      %s33 = sadd.s32 1, %s24
      %s34 = scalar_select %p31, %s33, %s24
      %p35 = scmp.ge.s32.totalorder %s34, 2
      %s36 = scalar_select %p35, 0, %s34
      %s37 = smul.u32 %s24, 2
      %s38 = sadd.s32 %s37, %s25
      %p39 = scmp.lt.s32.totalorder %s38, 3
      %s40 = scalar_select %p39, %s38, 3
      %s41 = smul.u32 %s36, 2
      %s42 = sadd.s32 %s41, %s32
      %p43 = scmp.lt.s32.totalorder %s42, 3
      %s44 = scalar_select %p43, %s42, 3
      %s45 = ssub.s32 %s40, %s44
      %p46 = scmp.eq.s32.totalorder %s45, 0
      %s48 = sadd.s32 %s47, 1
      %s49 = scalar_select %p46, %s47, %s48
      %p52 = pneg %p46
      %p53 = scmp.eq.s32.totalorder %s17, 3
      %p54 = por %p52, %p53
      %p55 = scmp.ne.s32.totalorder %s47, %s50
      %p56 = scmp.eq.s32.totalorder %s17, 0
      %p57 = por %p55, %p56
      %p58 = scmp.ne.s32.totalorder %s47, %s50
      %p59 = scmp.eq.s32.totalorder %s22, 3
      %p60 = por %p58, %p59
      %p61 = scmp.ne.s32.totalorder %s50, %s51
      %p62 = scmp.eq.s32.totalorder %s22, 0
      %p63 = por %p61, %p62
      %p64 = scmp.ne.s32.totalorder %s50, %s51
      %p65 = scmp.eq.s32.totalorder %s23, 3
      %p66 = por %p64, %p65
      %p68 = scmp.ne.s32.totalorder %s51, %s67
      %p69 = scmp.eq.s32.totalorder %s23, 0
      %p70 = por %p68, %p69
      %s71 = smul.u32 %s24, 2
      %s72 = sadd.s32 %s71, %s25
      %p73 = scmp.lt.s32.totalorder %s72, 3
      %s74 = scalar_select %p73, %s72, 3
      %s75 = smul.u32 %s36, 2
      %s76 = sadd.s32 %s75, %s32
      %p77 = scmp.lt.s32.totalorder %s76, 3
      %s78 = scalar_select %p77, %s76, 3
      %s79 = ssub.s32 %s74, %s78
      %p80 = scmp.eq.s32.totalorder %s79, 0
      %s82 = sadd.s32 %s81, 1
      %s83 = scalar_select %p80, %s81, %s82
      %p86 = pneg %p80
      %p87 = scmp.eq.s32.totalorder %s17, 3
      %p88 = por %p86, %p87
      %p89 = scmp.ne.s32.totalorder %s81, %s84
      %p90 = scmp.eq.s32.totalorder %s17, 0
      %p91 = por %p89, %p90
      %p92 = scmp.ne.s32.totalorder %s81, %s84
      %p93 = scmp.eq.s32.totalorder %s22, 3
      %p94 = por %p92, %p93
      %p95 = scmp.ne.s32.totalorder %s84, %s85
      %p96 = scmp.eq.s32.totalorder %s22, 0
      %p97 = por %p95, %p96
      %p98 = scmp.ne.s32.totalorder %s84, %s85
      %p99 = scmp.eq.s32.totalorder %s23, 3
      %p100 = por %p98, %p99
      %p102 = scmp.ne.s32.totalorder %s85, %s101
      %p103 = scmp.eq.s32.totalorder %s23, 0
      %p104 = por %p102, %p103
      %s105 = ssub.s32 %s24, %s36
      %p106 = scmp.eq.s32.totalorder %s105, 0
      %s108 = sadd.s32 %s107, 1
      %s109 = scalar_select %p106, %s107, %s108
      %p112 = pneg %p106
      %p113 = scmp.eq.s32.totalorder %s17, 3
      %p114 = por %p112, %p113
      %p115 = scmp.ne.s32.totalorder %s107, %s110
      %p116 = scmp.eq.s32.totalorder %s17, 0
      %p117 = por %p115, %p116
      %p118 = scmp.ne.s32.totalorder %s107, %s110
      %p119 = scmp.eq.s32.totalorder %s22, 3
      %p120 = por %p118, %p119
      %p121 = scmp.ne.s32.totalorder %s110, %s111
      %p122 = scmp.eq.s32.totalorder %s22, 0
      %p123 = por %p121, %p122
      %p124 = scmp.ne.s32.totalorder %s110, %s111
      %p125 = scmp.eq.s32.totalorder %s23, 3
      %p126 = por %p124, %p125
      %p128 = scmp.ne.s32.totalorder %s111, %s127
      %p129 = scmp.eq.s32.totalorder %s23, 0
      %p130 = por %p128, %p129
      %p131 = scmp.le.s32.totalorder 1, %s17
      %p132 = scmp.lt.s32.totalorder %s17, 5
      %p133 = pnand %p131, %p132
      %p134 = pneg %p133
      // Predicated region
      $region9: #{tpu_custom_call.1} parent=5 // pred_check
        _
      $region10: #{tpu_custom_call.1} parent=5 // pred_check_branch
        %136 = sbr.rel (%p133) target = $region12
      $region11: #{tpu_custom_call.1} parent=5 // pred_region
        %s137 = ssub.s32 %s17, 1
      $region12: #{tpu_custom_call.1} parent=5 // pred_fallthru
        _
      %p138 = scmp.lt.s32.totalorder %s17, 4
      // Predicated region
      $region13: #{tpu_custom_call.1} parent=5 // pred_check
        %p139 = pneg %p138
      $region14: #{tpu_custom_call.1} parent=5 // pred_check_branch
        %141 = sbr.rel (%p139) target = $region16
      $region15: #{tpu_custom_call.1} parent=5 // pred_region
        // Predicated region
        $region17: #{tpu_custom_call.1} parent=15 // pred_check
          %p142 = pneg %p57
        $region18: #{tpu_custom_call.1} parent=15 // pred_check_branch
          %144 = sbr.rel (%p142) target = $region20
        $region19: #{tpu_custom_call.1} parent=15 // pred_region
          %s145 = sand.u32 %s47, 1
          %s146 = scalar_lea.sflag [#allocation3], %s145
          %s147 = sand.u32 %s47, 1
          %s148 = smul.addr %s147, 8
          %s149 = scalar_lea.vmem [#allocation2], %s148
          %s150 = smul.u32 %s24, 2
          %s151 = sadd.s32 %s150, %s25
          %p152 = scmp.lt.s32.totalorder %s151, 3
          %s153 = scalar_select %p152, %s151, 3
          %155 = vsyncadd %s146, 0
          %s156 = smul.addr %s153, 8
          %s157 = scalar_lea.hbm %s0, %s156
          %s159 = sshll.u32 %s157, 4
          %s160 = int_to_ptr.hbm [resolvable:$true] %s159
          %s161 = sshll.u32 %s149, 4
          %s162 = int_to_ptr.vmem [resolvable:$true] %s161
          %164 = dma.hbm_to_vmem [thread:$0]  %s160, 128, %s162, %s146
        $region20: #{tpu_custom_call.1} parent=15 // pred_fallthru
          _
        // Predicated region
        $region21: #{tpu_custom_call.1} parent=15 // pred_check
          %p165 = pneg %p91
        $region22: #{tpu_custom_call.1} parent=15 // pred_check_branch
          %167 = sbr.rel (%p165) target = $region24
        $region23: #{tpu_custom_call.1} parent=15 // pred_region
          %s168 = sand.u32 %s81, 1
          %s169 = scalar_lea.sflag [#allocation6], %s168
          %s170 = sand.u32 %s81, 1
          %s171 = smul.addr %s170, 8
          %s172 = scalar_lea.vmem [#allocation5], %s171
          %s173 = smul.u32 %s24, 2
          %s174 = sadd.s32 %s173, %s25
          %p175 = scmp.lt.s32.totalorder %s174, 3
          %s176 = scalar_select %p175, %s174, 3
          %178 = vsyncadd %s169, 0
          %s179 = smul.addr %s176, 8
          %s180 = scalar_lea.hbm %s1, %s179
          %s182 = sshll.u32 %s180, 4
          %s183 = int_to_ptr.hbm [resolvable:$true] %s182
          %s184 = sshll.u32 %s172, 4
          %s185 = int_to_ptr.vmem [resolvable:$true] %s184
          %187 = dma.hbm_to_vmem [thread:$0]  %s183, 128, %s185, %s169
        $region24: #{tpu_custom_call.1} parent=15 // pred_fallthru
          _
      $region16: #{tpu_custom_call.1} parent=5 // pred_fallthru
        _
      %p188 = scmp.le.s32.totalorder 1, %s17
      %p189 = scmp.lt.s32.totalorder %s17, 5
      %p190 = pnand %p188, %p189
      %p191 = pneg %p190
      // Predicated region
      $region25: #{tpu_custom_call.1} parent=5 // pred_check
        _
      $region26: #{tpu_custom_call.1} parent=5 // pred_check_branch
        %193 = sbr.rel (%p190) target = $region28
      $region27: #{tpu_custom_call.1} parent=5 // pred_region
        %s194 = ssub.s32 %s17, 1
        %s195 = sand.u32 %s50, 1
        %s196 = scalar_lea.sflag [#allocation3], %s195
        %s197 = sand.u32 %s50, 1
        %s198 = smul.addr %s197, 8
        %s199 = scalar_lea.vmem [#allocation2], %s198
        // Predicated region
        $region29: #{tpu_custom_call.1} parent=27 // pred_check
          %p200 = pneg %p63
        $region30: #{tpu_custom_call.1} parent=27 // pred_check_branch
          %202 = sbr.rel (%p200) target = $region32
        $region31: #{tpu_custom_call.1} parent=27 // pred_region
          %204 = dma.done %s196, 128
        $region32: #{tpu_custom_call.1} parent=27 // pred_fallthru
          _
        %s205 = sand.u32 %s84, 1
        %s206 = scalar_lea.sflag [#allocation6], %s205
        %s207 = sand.u32 %s84, 1
        %s208 = smul.addr %s207, 8
        %s209 = scalar_lea.vmem [#allocation5], %s208
        // Predicated region
        $region33: #{tpu_custom_call.1} parent=27 // pred_check
          %p210 = pneg %p97
        $region34: #{tpu_custom_call.1} parent=27 // pred_check_branch
          %212 = sbr.rel (%p210) target = $region36
        $region35: #{tpu_custom_call.1} parent=27 // pred_region
          %214 = dma.done %s206, 128
        $region36: #{tpu_custom_call.1} parent=27 // pred_fallthru
          _
        %s215 = sand.u32 %s50, 1
        %s216 = scalar_lea.sflag [#allocation3], %s215
        %s217 = sand.u32 %s50, 1
        %s218 = smul.addr %s217, 8
        %s219 = scalar_lea.vmem [#allocation2], %s218
        %p220 = pneg %p63
        %p221 = pneg %p60
        %s222 = sand.u32 %s84, 1
        %s223 = scalar_lea.sflag [#allocation6], %s222
        %s224 = sand.u32 %s84, 1
        %s225 = smul.addr %s224, 8
        %s226 = scalar_lea.vmem [#allocation5], %s225
        %p227 = pneg %p97
        %p228 = pneg %p94
        %p229 = pneg %p123
        %p230 = pneg %p120
        %s231 = sand.u32 %s110, 1
        %s232 = scalar_lea.sflag [#allocation4], %s231
        %s233 = sand.u32 %s110, 1
        %s234 = smul.addr %s233, 8
        %s235 = scalar_lea.vmem [#allocation7], %s234
        %s236 = smul.u32 %s26, 2
        %s237 = sadd.s32 %s236, %s27
        %p238 = scmp.lt.s32.totalorder %s237, 3
        %s239 = scalar_select %p238, %s237, 3
        %s240 = smul.u32 %s26, 2
        %s241 = sadd.s32 %s240, %s27
        %p242 = scmp.lt.s32.totalorder %s241, 3
        %s243 = scalar_select %p242, %s241, 3
        %p244 = scmp.eq.s32.totalorder %s27, 0
        // Predicated region
        $region37: #{tpu_custom_call.1} parent=27 // pred_check
          %p245 = pneg %p244
        $region38: #{tpu_custom_call.1} parent=27 // pred_check_branch
          %247 = sbr.rel (%p245) target = $region40
        $region39: #{tpu_custom_call.1} parent=27 // pred_region
          %248 = vst [vmem:[%s235] sm:$0xff] 0.0
        $region40: #{tpu_custom_call.1} parent=27 // pred_fallthru
          _
        %v249 = vld [vmem:[%s199] sm:$0xff]
        %v250 = vld [vmem:[%s209] sm:$0xff]
        %v251 = vsub.f32 %v249, %v250
        %v252 = vmul.f32 %v251, %v251
        %s253 = smul.u32 %s26, 2
        %s254 = sadd.s32 %s253, %s27
        %s255 = smul.u32 %s254, 8
        %s256 = sadd.s32 %s255, 8
        %p257 = scmp.le.s32.totalorder %s256, 32
        // Predicated region
        $region41: #{tpu_custom_call.1} parent=27 // pred_check
          %p258 = pneg %p257
        $region42: #{tpu_custom_call.1} parent=27 // pred_check_branch
          %260 = sbr.rel (%p258) target = $region44
        $region43: #{tpu_custom_call.1} parent=27 // pred_region
          %v261 = vld [vmem:[%s235] sm:$0xff]
          %v262 = vadd.f32 %v252, 0.0
          %v263 = vadd.f32 %v261, %v262
          %264 = vst [vmem:[%s235] sm:$0xff] %v263
        $region44: #{tpu_custom_call.1} parent=27 // pred_fallthru
          _
        %p265 = scmp.gt.s32.totalorder %s256, 32
        // Predicated region
        $region45: #{tpu_custom_call.1} parent=27 // pred_check
          %p266 = pneg %p265
        $region46: #{tpu_custom_call.1} parent=27 // pred_check_branch
          %268 = sbr.rel (%p266) target = $region48
        $region47: #{tpu_custom_call.1} parent=27 // pred_region
          %v269 = vlaneseq
          %v270 = vshrl.u32 %v269, 7
          %v271 = vstv %s255
          %v272 = vadd.s32 %v271, %v270
          %v273 = vlaneseq
          %v274 = vand.u32 %v273, 127
          %vm275 = vcmp.lt.s32.totalorder %v272, 32
          %vm276 = vcmp.eq.s32.totalorder %v272, 32
          %vm277 = vcmp.lt.s32.totalorder %v274, 0
          %vm278 = vmand %vm276, %vm277
          %vm279 = vmor %vm275, %vm278
          %v280 = vsel %vm279, %v252, 0.0
          %v281 = vld [vmem:[%s235] sm:$0xff]
          %v282 = vadd.f32 %v280, 0.0
          %v283 = vadd.f32 %v281, %v282
          %284 = vst [vmem:[%s235] sm:$0xff] %v283
        $region48: #{tpu_custom_call.1} parent=27 // pred_fallthru
          _
        %s285 = sand.u32 %s110, 1
        %s286 = scalar_lea.sflag [#allocation4], %s285
        %s287 = sand.u32 %s110, 1
        %s288 = smul.addr %s287, 8
        %s289 = scalar_lea.vmem [#allocation7], %s288
        // Predicated region
        $region49: #{tpu_custom_call.1} parent=27 // pred_check
          %p290 = pneg %p120
        $region50: #{tpu_custom_call.1} parent=27 // pred_check_branch
          %292 = sbr.rel (%p290) target = $region52
        $region51: #{tpu_custom_call.1} parent=27 // pred_region
          %294 = vsyncadd %s286, 0
          %s295 = smul.addr %s26, 8
          %s296 = scalar_lea.hbm %s2, %s295
          %s298 = sshll.u32 %s289, 4
          %s299 = int_to_ptr.vmem [resolvable:$true] %s298
          %s300 = sshll.u32 %s296, 4
          %s301 = int_to_ptr.hbm [resolvable:$true] %s300
          %303 = dma.vmem_to_hbm [thread:$0]  %s299, 128, %s301, %s286
        $region52: #{tpu_custom_call.1} parent=27 // pred_fallthru
          _
      $region28: #{tpu_custom_call.1} parent=5 // pred_fallthru
        _
      %p304 = scmp.le.s32.totalorder 2, %s17
      // Predicated region
      $region53: #{tpu_custom_call.1} parent=5 // pred_check
        %p305 = pneg %p304
      $region54: #{tpu_custom_call.1} parent=5 // pred_check_branch
        %307 = sbr.rel (%p305) target = $region56
      $region55: #{tpu_custom_call.1} parent=5 // pred_region
        %s308 = ssub.s32 %s17, 2
        // Predicated region
        $region57: #{tpu_custom_call.1} parent=55 // pred_check
          %p309 = pneg %p126
        $region58: #{tpu_custom_call.1} parent=55 // pred_check_branch
          %311 = sbr.rel (%p309) target = $region60
        $region59: #{tpu_custom_call.1} parent=55 // pred_region
          %s312 = sand.u32 %s111, 1
          %s313 = scalar_lea.sflag [#allocation4], %s312
          %s314 = sand.u32 %s111, 1
          %s315 = smul.addr %s314, 8
          %s316 = scalar_lea.vmem [#allocation7], %s315
          %318 = dma.done %s313, 128
        $region60: #{tpu_custom_call.1} parent=55 // pred_fallthru
          _
      $region56: #{tpu_custom_call.1} parent=5 // pred_fallthru
        _
    $region6: #{tpu_custom_call.1} parent=1 // loop_footer
      %s21 = sadd.s32 1, %s17
    $region7: #{tpu_custom_call.1} parent=1 // loop_footer_branch
      %16 = sbr.rel target = $region3
    $region8: #{tpu_custom_call.1} parent=1 // loop_exit
      _
    %319 = vsyncpa [#allocation3], 1
    %s320 = scalar_lea.sflag [#allocation3], 1
    %321 = vsyncpa %s320, 1
    %322 = vsyncpa [#allocation6], 1
    %s323 = scalar_lea.sflag [#allocation6], 1
    %324 = vsyncpa %s323, 1
    %325 = vsyncpa [#allocation4], 1
    %s326 = scalar_lea.sflag [#allocation4], 1
    %327 = vsyncpa %s326, 1

</llo_original>
